<compile_context>
chip_gen: v7x
topology: tpu7x:2x2x1
jax: 0.10.0
libtpu: 0.0.40
codegen_flags: <defaults>
</compile_context>

<pallas_src>
import math
import jax
import jax.numpy as jnp
from jax.experimental import pallas as pl
from jax.experimental.pallas import tpu as pltpu


def _mlp_value_kernel(x_ref, w1_ref, b1_ref, w2_ref, b2_ref, w3_ref, b3_ref,
                      wvt_ref, bv_ref, value_ref):
    x = x_ref[...]

    h1 = jnp.dot(x, w1_ref[...], preferred_element_type=jnp.float32) + b1_ref[...]
    h1 = jnp.maximum(h1, 0.0)

    h2 = jnp.dot(h1.astype(w2_ref.dtype), w2_ref[...],
                 preferred_element_type=jnp.float32) + b2_ref[...]
    h2 = jnp.maximum(h2, 0.0)

    h3 = jnp.dot(h2.astype(w3_ref.dtype), w3_ref[...],
                 preferred_element_type=jnp.float32) + b3_ref[...]
    h3 = jnp.maximum(h3, 0.0)

    # Value head, lane-dense: (1,128) x (TM,128) contracted on the feature axis
    # -> (1, TM), so the store is a contiguous, unmasked lane-dense write.
    v = jnp.einsum('ok,mk->om', wvt_ref[...], h3.astype(wvt_ref.dtype),
                   preferred_element_type=jnp.float32)
    value_ref[...] = jnp.tanh(v + bv_ref[...])


def _round_up(a, b):
    return (a + b - 1) // b * b


def c_model_forward(x, params, *, block_m=512, use_bf16=False):
    """x: any shape with total elements divisible by 16. Returns (N, 1) float32."""
    # NOTE: for tiny batches (N <= ~64) plain XLA would fuse this just as well;
    # the Pallas path is kept unconditional here for test coverage.
    (w1, b1, w2, b2, w3, b3, _wa, _ba, wv, bv) = params  # action head params unused

    x = jnp.asarray(x, jnp.float32).reshape(-1, 16)
    n = x.shape[0]

    assert block_m % 128 == 0, "block_m must be a multiple of 128 (lane-dense out)"
    tm = block_m if n > block_m else _round_up(max(n, 8), 8)
    n_pad = _round_up(n, tm)
    if n_pad != n:
        x = jnp.pad(x, ((0, n_pad - n), (0, 0)))

    wv_t = wv.T  # (1, 128): value head weights, row-vector form for the einsum
    if use_bf16:
        x = x.astype(jnp.bfloat16)
        w1c, w2c, w3c, wv_tc = (w.astype(jnp.bfloat16) for w in (w1, w2, w3, wv_t))
    else:
        w1c, w2c, w3c, wv_tc = w1, w2, w3, wv_t

    num_tiles = n_pad // tm

    def const_spec(shape):
        return pl.BlockSpec(shape, lambda i: (0,) * len(shape))

    out = pl.pallas_call(
        _mlp_value_kernel,
        grid=(num_tiles,),
        in_specs=[
            pl.BlockSpec((tm, 16), lambda i: (i, 0)),   # x tiles over the batch axis
            const_spec(w1c.shape), const_spec(b1.shape),
            const_spec(w2c.shape), const_spec(b2.shape),
            const_spec(w3c.shape), const_spec(b3.shape),
            const_spec(wv_tc.shape), const_spec(bv.shape),
        ],
        out_specs=pl.BlockSpec((1, tm), lambda i: (0, i)),
        out_shape=jax.ShapeDtypeStruct((1, n_pad), jnp.float32),
        compiler_params=pltpu.CompilerParams(
            dimension_semantics=("parallel",),
            vmem_limit_bytes=32 * 1024 * 1024,
        ),
    )(x, w1c, b1, w2c, b2, w3c, b3, wv_tc, bv)

    return out.reshape(n_pad, 1)[:n]


def init_params(key, board_size=16):
    """Deterministic init mimicking nn.Linear (uniform(-1/sqrt(fan_in), ...))."""
    def linear(key, fan_in, fan_out):
        kw, kb = jax.random.split(key)
        bound = 1.0 / math.sqrt(fan_in)
        w = jax.random.uniform(kw, (fan_in, fan_out), jnp.float32, -bound, bound)
        b = jax.random.uniform(kb, (1, fan_out), jnp.float32, -bound, bound)
        return w, b

    k1, k2, k3, k4, k5 = jax.random.split(key, 5)
    w1, b1 = linear(k1, board_size, 16)
    w2, b2 = linear(k2, 16, 16)
    w3, b3 = linear(k3, 16, 128)
    wa, ba = linear(k4, 128, 16)    # action head (kept in params, unused by return)
    wv, bv = linear(k5, 128, 1)
    return (w1, b1, w2, b2, w3, b3, wa, ba, wv, bv)


def _reference_forward(x, params):
    (w1, b1, w2, b2, w3, b3, _wa, _ba, wv, bv) = params
    x = jnp.asarray(x, jnp.float32).reshape(-1, 16)
    h1 = jax.nn.relu(x @ w1 + b1)
    h2 = jax.nn.relu(h1 @ w2 + b2)
    h3 = jax.nn.relu(h2 @ w3 + b3)
    return jnp.tanh(h3 @ wv + bv)


if __name__ == "__main__":
    board_size = 16
    key = jax.random.PRNGKey(0)
    kx1, kx2, kp = jax.random.split(key, 3)
    params = init_params(kp, board_size)

    # --- small case: 8 boards of 4x4 -> x.view(-1, 16) gives N=8, single tile ---
    x_small = jax.random.normal(kx1, (8, 4, 4), dtype=jnp.float32)
    out_small = jax.block_until_ready(c_model_forward(x_small, params))
    ref_small = _reference_forward(x_small, params)
    assert out_small.shape == (8, 1), out_small.shape
    assert jnp.allclose(out_small, ref_small, atol=1e-5, rtol=1e-5), "small f32 mismatch"

    # --- gridded case: N=600 rows, TM=256 -> 3 tiles with tail padding ---
    x_big = jax.random.normal(kx2, (150, 4, 16), dtype=jnp.float32)  # 600 rows of 16
    out_big = jax.block_until_ready(c_model_forward(x_big, params, block_m=256))
    ref_big = _reference_forward(x_big, params)
    assert out_big.shape == (600, 1), out_big.shape
    assert jnp.allclose(out_big, ref_big, atol=1e-5, rtol=1e-5), "gridded f32 mismatch"

    # --- bf16 inputs / f32 accumulation (v6e/v7x memory-bound path) ---
    out_bf16 = jax.block_until_ready(
        c_model_forward(x_big, params, block_m=256, use_bf16=True))
    assert out_bf16.shape == (600, 1), out_bf16.shape
    assert bool(jnp.all(jnp.isfinite(out_bf16))), "bf16 produced non-finite values"
    assert jnp.allclose(out_bf16, ref_big, atol=5e-2), "bf16 path diverged from reference"

    print("KERNEL_OK")
</pallas_src>

<mosaic_0001>
module attributes {stable_mosaic.version = 11 : i64} {
  func.func @_mlp_value_kernel(%arg0: i32, %arg1: memref<8x16xf32, #tpu.memory_space<vmem>>, %arg2: memref<16x16xf32, #tpu.memory_space<vmem>>, %arg3: memref<1x16xf32, #tpu.memory_space<vmem>>, %arg4: memref<16x16xf32, #tpu.memory_space<vmem>>, %arg5: memref<1x16xf32, #tpu.memory_space<vmem>>, %arg6: memref<16x128xf32, #tpu.memory_space<vmem>>, %arg7: memref<1x128xf32, #tpu.memory_space<vmem>>, %arg8: memref<1x128xf32, #tpu.memory_space<vmem>>, %arg9: memref<1x1xf32, #tpu.memory_space<vmem>>, %arg10: memref<1x8xf32, #tpu.memory_space<vmem>>) attributes {dimension_semantics = [#tpu.dimension_semantics<parallel>], iteration_bounds = array<i64: 1>, scalar_prefetch = 0 : i64, scratch_operands = 0 : i64, tpu.core_type = #tpu.core_type<tc>, window_params = [{transform_indices = @transform_0, window_bounds = array<i64: 8, 16>}, {pipeline_mode = #tpu.pipeline_mode<synchronous>, transform_indices = @transform_1, window_bounds = array<i64: 16, 16>}, {pipeline_mode = #tpu.pipeline_mode<synchronous>, transform_indices = @transform_2, window_bounds = array<i64: 1, 16>}, {pipeline_mode = #tpu.pipeline_mode<synchronous>, transform_indices = @transform_3, window_bounds = array<i64: 16, 16>}, {pipeline_mode = #tpu.pipeline_mode<synchronous>, transform_indices = @transform_4, window_bounds = array<i64: 1, 16>}, {pipeline_mode = #tpu.pipeline_mode<synchronous>, transform_indices = @transform_5, window_bounds = array<i64: 16, 128>}, {pipeline_mode = #tpu.pipeline_mode<synchronous>, transform_indices = @transform_6, window_bounds = array<i64: 1, 128>}, {pipeline_mode = #tpu.pipeline_mode<synchronous>, transform_indices = @transform_7, window_bounds = array<i64: 1, 128>}, {pipeline_mode = #tpu.pipeline_mode<synchronous>, transform_indices = @transform_8, window_bounds = array<i64: 1, 1>}, {transform_indices = @transform_9, window_bounds = array<i64: 1, 8>}]} {
    %c0 = arith.constant 0 : index
    %c0_0 = arith.constant 0 : index
    %0 = vector.load %arg1[%c0, %c0_0] : memref<8x16xf32, #tpu.memory_space<vmem>>, vector<8x16xf32>
    %c0_1 = arith.constant 0 : index
    %c0_2 = arith.constant 0 : index
    %1 = vector.load %arg2[%c0_1, %c0_2] : memref<16x16xf32, #tpu.memory_space<vmem>>, vector<16x16xf32>
    %cst = arith.constant dense<0.000000e+00> : vector<8x16xf32>
    %2 = tpu.matmul %0, %1, %cst {dimension_numbers = #tpu.dot_dimension_numbers<[1], [0], [0], [1], [0, 0, 1, 1], [], []>} : vector<8x16xf32>, vector<16x16xf32>, vector<8x16xf32> -> vector<8x16xf32>
    %c0_3 = arith.constant 0 : index
    %c0_4 = arith.constant 0 : index
    %3 = vector.load %arg3[%c0_3, %c0_4] : memref<1x16xf32, #tpu.memory_space<vmem>>, vector<1x16xf32>
    %4 = vector.broadcast %3 : vector<1x16xf32> to vector<8x16xf32>
    %5 = arith.addf %2, %4 : vector<8x16xf32>
    %cst_5 = arith.constant 0.000000e+00 : f32
    %6 = vector.broadcast %cst_5 : f32 to vector<8x16xf32>
    %7 = arith.maximumf %5, %6 : vector<8x16xf32>
    %c0_6 = arith.constant 0 : index
    %c0_7 = arith.constant 0 : index
    %8 = vector.load %arg4[%c0_6, %c0_7] : memref<16x16xf32, #tpu.memory_space<vmem>>, vector<16x16xf32>
    %cst_8 = arith.constant dense<0.000000e+00> : vector<8x16xf32>
    %9 = tpu.matmul %7, %8, %cst_8 {dimension_numbers = #tpu.dot_dimension_numbers<[1], [0], [0], [1], [0, 0, 1, 1], [], []>} : vector<8x16xf32>, vector<16x16xf32>, vector<8x16xf32> -> vector<8x16xf32>
    %c0_9 = arith.constant 0 : index
    %c0_10 = arith.constant 0 : index
    %10 = vector.load %arg5[%c0_9, %c0_10] : memref<1x16xf32, #tpu.memory_space<vmem>>, vector<1x16xf32>
    %11 = vector.broadcast %10 : vector<1x16xf32> to vector<8x16xf32>
    %12 = arith.addf %9, %11 : vector<8x16xf32>
    %cst_11 = arith.constant 0.000000e+00 : f32
    %13 = vector.broadcast %cst_11 : f32 to vector<8x16xf32>
    %14 = arith.maximumf %12, %13 : vector<8x16xf32>
    %c0_12 = arith.constant 0 : index
    %c0_13 = arith.constant 0 : index
    %15 = vector.load %arg6[%c0_12, %c0_13] : memref<16x128xf32, #tpu.memory_space<vmem>>, vector<16x128xf32>
    %cst_14 = arith.constant dense<0.000000e+00> : vector<8x128xf32>
    %16 = tpu.matmul %14, %15, %cst_14 {dimension_numbers = #tpu.dot_dimension_numbers<[1], [0], [0], [1], [0, 0, 1, 1], [], []>} : vector<8x16xf32>, vector<16x128xf32>, vector<8x128xf32> -> vector<8x128xf32>
    %c0_15 = arith.constant 0 : index
    %c0_16 = arith.constant 0 : index
    %17 = vector.load %arg7[%c0_15, %c0_16] : memref<1x128xf32, #tpu.memory_space<vmem>>, vector<1x128xf32>
    %18 = vector.broadcast %17 : vector<1x128xf32> to vector<8x128xf32>
    %19 = arith.addf %16, %18 : vector<8x128xf32>
    %cst_17 = arith.constant 0.000000e+00 : f32
    %20 = vector.broadcast %cst_17 : f32 to vector<8x128xf32>
    %21 = arith.maximumf %19, %20 : vector<8x128xf32>
    %c0_18 = arith.constant 0 : index
    %c0_19 = arith.constant 0 : index
    %22 = vector.load %arg8[%c0_18, %c0_19] : memref<1x128xf32, #tpu.memory_space<vmem>>, vector<1x128xf32>
    "tpu.trace_start"() <{level = 10 : i32, message = "ok,mk->om"}> : () -> ()
    %cst_20 = arith.constant dense<0.000000e+00> : vector<1x8xf32>
    %23 = tpu.matmul %22, %21, %cst_20 {dimension_numbers = #tpu.dot_dimension_numbers<[1], [1], [0], [0], [0, 0, 1, 0], [], []>} : vector<1x128xf32>, vector<8x128xf32>, vector<1x8xf32> -> vector<1x8xf32>
    "tpu.trace_stop"() : () -> ()
    %c0_21 = arith.constant 0 : index
    %c0_22 = arith.constant 0 : index
    %24 = vector.load %arg9[%c0_21, %c0_22] : memref<1x1xf32, #tpu.memory_space<vmem>>, vector<1x1xf32>
    %25 = vector.broadcast %24 : vector<1x1xf32> to vector<1x8xf32>
    %26 = arith.addf %23, %25 : vector<1x8xf32>
    %27 = math.tanh %26 : vector<1x8xf32>
    %c0_23 = arith.constant 0 : index
    %c0_24 = arith.constant 0 : index
    %28 = vector.load %arg10[%c0_23, %c0_24] : memref<1x8xf32, #tpu.memory_space<vmem>>, vector<1x8xf32>
    tpu.vector_store %arg10[%c0_23, %c0_24], %27 {strides = array<i32>} : memref<1x8xf32, #tpu.memory_space<vmem>>, vector<1x8xf32>,
    return
  }
  func.func @transform_0(%arg0: i32) -> (i32, i32) {
    %c0_i32 = arith.constant 0 : i32
    %c0_i32_0 = arith.constant 0 : i32
    return %arg0, %c0_i32 : i32, i32
  }
  func.func @transform_1(%arg0: i32) -> (i32, i32) {
    %c0_i32 = arith.constant 0 : i32
    %c0_i32_0 = arith.constant 0 : i32
    %c0_i32_1 = arith.constant 0 : i32
    return %c0_i32, %c0_i32_0 : i32, i32
  }
  func.func @transform_2(%arg0: i32) -> (i32, i32) {
    %c0_i32 = arith.constant 0 : i32
    %c0_i32_0 = arith.constant 0 : i32
    %c0_i32_1 = arith.constant 0 : i32
    return %c0_i32, %c0_i32_0 : i32, i32
  }
  func.func @transform_3(%arg0: i32) -> (i32, i32) {
    %c0_i32 = arith.constant 0 : i32
    %c0_i32_0 = arith.constant 0 : i32
    %c0_i32_1 = arith.constant 0 : i32
    return %c0_i32, %c0_i32_0 : i32, i32
  }
  func.func @transform_4(%arg0: i32) -> (i32, i32) {
    %c0_i32 = arith.constant 0 : i32
    %c0_i32_0 = arith.constant 0 : i32
    %c0_i32_1 = arith.constant 0 : i32
    return %c0_i32, %c0_i32_0 : i32, i32
  }
  func.func @transform_5(%arg0: i32) -> (i32, i32) {
    %c0_i32 = arith.constant 0 : i32
    %c0_i32_0 = arith.constant 0 : i32
    %c0_i32_1 = arith.constant 0 : i32
    return %c0_i32, %c0_i32_0 : i32, i32
  }
  func.func @transform_6(%arg0: i32) -> (i32, i32) {
    %c0_i32 = arith.constant 0 : i32
    %c0_i32_0 = arith.constant 0 : i32
    %c0_i32_1 = arith.constant 0 : i32
    return %c0_i32, %c0_i32_0 : i32, i32
  }
  func.func @transform_7(%arg0: i32) -> (i32, i32) {
    %c0_i32 = arith.constant 0 : i32
    %c0_i32_0 = arith.constant 0 : i32
    %c0_i32_1 = arith.constant 0 : i32
    return %c0_i32, %c0_i32_0 : i32, i32
  }
  func.func @transform_8(%arg0: i32) -> (i32, i32) {
    %c0_i32 = arith.constant 0 : i32
    %c0_i32_0 = arith.constant 0 : i32
    %c0_i32_1 = arith.constant 0 : i32
    return %c0_i32, %c0_i32_0 : i32, i32
  }
  func.func @transform_9(%arg0: i32) -> (i32, i32) {
    %c0_i32 = arith.constant 0 : i32
    %c0_i32_0 = arith.constant 0 : i32
    return %c0_i32, %arg0 : i32, i32
  }
}

</mosaic_0001>

<llo_original>
// kernel: tpu_custom_call.1
$region0: #{tpu_custom_call.1}
  #allocation0 [shape = 'u32[]', space=smem, size = 0x4, offset = 0x4, fixed_abs, tag = 'smem constant byte address 0x4 - core index']
  #allocation1 [shape = 'u32[144,128]{1,0:T(1,128)}', space=vmem, size = 0x12000, scoped, tag = 'internal scratch']
  #allocation2 [shape = 'f32[1,1]{1,0:T(1,128)S(1)}', space=vmem, size = 0x200, scoped, tag = 'scoped memory for tpu_custom_call.1']
  %s0 = inlined_call_operand.hbm [shape: f32[8,16], index: 0, kind: input, shape index: {}]
  %s1 = inlined_call_operand.hbm [shape: f32[16,16], index: 1, kind: input, shape index: {}]
  %s2 = inlined_call_operand.vmem [shape: f32[1,16], index: 2, kind: input, shape index: {}]
  %s3 = inlined_call_operand.hbm [shape: f32[16,16], index: 3, kind: input, shape index: {}]
  %s4 = inlined_call_operand.vmem [shape: f32[1,16], index: 4, kind: input, shape index: {}]
  %s5 = inlined_call_operand.vmem [shape: f32[16,128], index: 5, kind: input, shape index: {}]
  %s6 = inlined_call_operand.vmem [shape: f32[1,128], index: 6, kind: input, shape index: {}]
  %s7 = inlined_call_operand.vmem [shape: f32[1,128], index: 7, kind: input, shape index: {}]
  %s8 = inlined_call_operand.<no memory space> [shape: f32[1,1], index: 8, kind: input, shape index: {}]
  %s9 = inlined_call_operand.hbm [shape: f32[1,8], index: 9, kind: output, shape index: {}]
  %s10 = sld [smem:[#allocation0]]
  $region58: #{tpu_custom_call.1} parent=0
    _
  %s12 = ssub.s32 1, %s10
  %s13 = scalar_select 0, %s12, %s10
  %v14 = vstv %s8
  %15 = vst [vmem:[#allocation2] sm:$0x1] %v14
  $region1: #{tpu_custom_call.1} parent=0
    #allocation3 [shape = 'u8[4096]{0}', space=vmem, size = 0x1000, scoped, tag = 'input window, operand 0, single buffered']
    #allocation4 [shape = 's32[1]{0}', space=sflag, size = 0x4, scoped, tag = 'scoped memory for tpu_custom_call.1']
    #allocation5 [shape = 's32[1]{0}', space=sflag, size = 0x4, scoped, tag = 'scoped memory for tpu_custom_call.1']
    #allocation6 [shape = 'u8[8192]{0}', space=vmem, size = 0x2000, scoped, tag = 'input window, operand 1, single buffered']
    #allocation7 [shape = 's32[1]{0}', space=sflag, size = 0x4, scoped, tag = 'scoped memory for tpu_custom_call.1']
    #allocation8 [shape = 'u8[8192]{0}', space=vmem, size = 0x2000, scoped, tag = 'input window, operand 3, single buffered']
    #allocation9 [shape = 'u8[512]{0}', space=vmem, size = 0x400, scoped, tag = 'output window, operand 0, single buffered']
    %16 = vsyncpa [#allocation4], 0
    %17 = vsyncpa [#allocation7], 0
    %18 = vsyncpa [#allocation5], 0
    // Predicated region
    $region2: #{tpu_custom_call.1} parent=1 // pred_check
      _
    $region3: #{tpu_custom_call.1} parent=1 // pred_check_branch
      %20 = sbr.rel (0) target = $region5
    $region4: #{tpu_custom_call.1} parent=1 // pred_region
      %s22 = ssub.s32 128, 128
      %23 = vsyncadd [#allocation4], %s22
      %s25 = sshll.u32 [#allocation3], 4
      %s26 = int_to_ptr.vmem [resolvable:$true] %s25
      %28 = dma.hbm_to_vmem [thread:$0]  %s0, 128, %s26, [#allocation4]
    $region5: #{tpu_custom_call.1} parent=1 // pred_fallthru
      _
    // Predicated region
    $region6: #{tpu_custom_call.1} parent=1 // pred_check
      _
    $region7: #{tpu_custom_call.1} parent=1 // pred_check_branch
      %30 = sbr.rel (0) target = $region9
    $region8: #{tpu_custom_call.1} parent=1 // pred_region
      %s32 = ssub.s32 256, 256
      %33 = vsyncadd [#allocation7], %s32
      %s34 = sshll.u32 [#allocation6], 4
      %s35 = int_to_ptr.vmem [resolvable:$true] %s34
      %40 = dma.hbm_to_vmem [thread:$0]  %s1, 256, %s35, [#allocation7], 128, 128, 8
    $region9: #{tpu_custom_call.1} parent=1 // pred_fallthru
      _
    // Predicated region
    $region10: #{tpu_custom_call.1} parent=1 // pred_check
      _
    $region11: #{tpu_custom_call.1} parent=1 // pred_check_branch
      %42 = sbr.rel (0) target = $region13
    $region12: #{tpu_custom_call.1} parent=1 // pred_region
      _
    $region13: #{tpu_custom_call.1} parent=1 // pred_fallthru
      _
    // Predicated region
    $region14: #{tpu_custom_call.1} parent=1 // pred_check
      _
    $region15: #{tpu_custom_call.1} parent=1 // pred_check_branch
      %44 = sbr.rel (0) target = $region17
    $region16: #{tpu_custom_call.1} parent=1 // pred_region
      %s46 = ssub.s32 256, 256
      %47 = vsyncadd [#allocation7], %s46
      %s48 = sshll.u32 [#allocation8], 4
      %s49 = int_to_ptr.vmem [resolvable:$true] %s48
      %54 = dma.hbm_to_vmem [thread:$0]  %s3, 256, %s49, [#allocation7], 128, 128, 8
    $region17: #{tpu_custom_call.1} parent=1 // pred_fallthru
      _
    // Predicated region
    $region18: #{tpu_custom_call.1} parent=1 // pred_check
      _
    $region19: #{tpu_custom_call.1} parent=1 // pred_check_branch
      %56 = sbr.rel (0) target = $region21
    $region20: #{tpu_custom_call.1} parent=1 // pred_region
      _
    $region21: #{tpu_custom_call.1} parent=1 // pred_fallthru
      _
    // Predicated region
    $region22: #{tpu_custom_call.1} parent=1 // pred_check
      _
    $region23: #{tpu_custom_call.1} parent=1 // pred_check_branch
      %58 = sbr.rel (0) target = $region25
    $region24: #{tpu_custom_call.1} parent=1 // pred_region
      _
    $region25: #{tpu_custom_call.1} parent=1 // pred_fallthru
      _
    // Predicated region
    $region26: #{tpu_custom_call.1} parent=1 // pred_check
      _
    $region27: #{tpu_custom_call.1} parent=1 // pred_check_branch
      %60 = sbr.rel (0) target = $region29
    $region28: #{tpu_custom_call.1} parent=1 // pred_region
      _
    $region29: #{tpu_custom_call.1} parent=1 // pred_fallthru
      _
    // Predicated region
    $region30: #{tpu_custom_call.1} parent=1 // pred_check
      _
    $region31: #{tpu_custom_call.1} parent=1 // pred_check_branch
      %62 = sbr.rel (0) target = $region33
    $region32: #{tpu_custom_call.1} parent=1 // pred_region
      _
    $region33: #{tpu_custom_call.1} parent=1 // pred_fallthru
      _
    // Predicated region
    $region34: #{tpu_custom_call.1} parent=1 // pred_check
      _
    $region35: #{tpu_custom_call.1} parent=1 // pred_check_branch
      %64 = sbr.rel (0) target = $region37
    $region36: #{tpu_custom_call.1} parent=1 // pred_region
      _
    $region37: #{tpu_custom_call.1} parent=1 // pred_fallthru
      _
    // Predicated region
    $region38: #{tpu_custom_call.1} parent=1 // pred_check
      _
    $region39: #{tpu_custom_call.1} parent=1 // pred_check_branch
      %66 = sbr.rel (0) target = $region41
    $region40: #{tpu_custom_call.1} parent=1 // pred_region
      %67 = dma.done [#allocation4], 128
    $region41: #{tpu_custom_call.1} parent=1 // pred_fallthru
      _
    // Predicated region
    $region42: #{tpu_custom_call.1} parent=1 // pred_check
      _
    $region43: #{tpu_custom_call.1} parent=1 // pred_check_branch
      %69 = sbr.rel (0) target = $region45
    $region44: #{tpu_custom_call.1} parent=1 // pred_region
      %70 = dma.done [#allocation7], 256
    $region45: #{tpu_custom_call.1} parent=1 // pred_fallthru
      _
    // Predicated region
    $region46: #{tpu_custom_call.1} parent=1 // pred_check
      _
    $region47: #{tpu_custom_call.1} parent=1 // pred_check_branch
      %72 = sbr.rel (0) target = $region49
    $region48: #{tpu_custom_call.1} parent=1 // pred_region
      %73 = dma.done [#allocation7], 256
    $region49: #{tpu_custom_call.1} parent=1 // pred_fallthru
      _
    %v74 = vld [vmem:[#allocation3] sm:$0xff]
    %v75 = vld [vmem:[#allocation6] sm:$0xff]
    %v76 = vld [vmem:[#allocation6 + $0x8] sm:$0xff]
    %v77 = vld [vmem:[%s2] sm:$0x1]
    %v79 = vlaneseq
    %v80 = vshrl.u32 %v79, 7
    %v81 = vsub.s32 0, %v80
    %v82 = vrot.slane %v77, %v81
    %vm84 = vcmask 130048
    %v86 = vsel %vm84, %v74, 0
    %88 = vmatprep.subr.mxu0 0.0
    %89 = vmatpush1.msra.mxu0 %v75
    %90 = vmatprep.subr.mxu0 0.0
    %91 = vmatpush1.msra.mxu0 %v76
    %92 = vmatprep.subr.mxu0 0.0
    %93 = vmatpush1.msra.mxu0 0.0
    %94 = vmatprep.subr.mxu0 0.0
    %95 = vmatpush1.msra.mxu0 0.0
    %96 = vmatprep.subr.mxu0 0.0
    %97 = vmatpush1.msra.mxu0 0.0
    %98 = vmatprep.subr.mxu0 0.0
    %99 = vmatpush1.msra.mxu0 0.0
    %100 = vmatprep.subr.mxu0 0.0
    %101 = vmatpush1.msra.mxu0 0.0
    %102 = vmatprep.subr.mxu0 0.0
    %103 = vmatpush1.msra.mxu0 0.0
    %104 = vmatprep.subr.mxu0 0.0
    %105 = vmatpush1.msra.mxu0 0.0
    %106 = vmatprep.subr.mxu0 0.0
    %107 = vmatpush1.msra.mxu0 0.0
    %108 = vmatprep.subr.mxu0 0.0
    %109 = vmatpush1.msra.mxu0 0.0
    %110 = vmatprep.subr.mxu0 0.0
    %111 = vmatpush1.msra.mxu0 0.0
    %112 = vmatprep.subr.mxu0 0.0
    %113 = vmatpush1.msra.mxu0 0.0
    %114 = vmatprep.subr.mxu0 0.0
    %115 = vmatpush1.msra.mxu0 0.0
    %116 = vmatprep.subr.mxu0 0.0
    %117 = vmatpush1.msra.mxu0 0.0
    %118 = vmatprep.subr.mxu0 0.0
    %119 = vmatpush1.msra.mxu0 0.0
    %120 = vmatprep.subr.mxu0 0.0
    %121 = vmatpush1.msra.mxu0 0.0
    %122 = vmatprep.subr.mxu0 0.0
    %123 = vmatpush1.msra.mxu0 0.0
    %124 = vmatprep.subr.mxu0 0.0
    %125 = vmatpush1.msra.mxu0 0.0
    %126 = vmatprep.subr.mxu0 0.0
    %127 = vmatpush1.msra.mxu0 0.0
    %128 = vmatprep.subr.mxu0 0.0
    %129 = vmatpush1.msra.mxu0 0.0
    %130 = vmatprep.subr.mxu0 0.0
    %131 = vmatpush1.msra.mxu0 0.0
    %132 = vmatprep.subr.mxu0 0.0
    %133 = vmatpush1.msra.mxu0 0.0
    %134 = vmatprep.subr.mxu0 0.0
    %135 = vmatpush1.msra.mxu0 0.0
    %136 = vmatprep.subr.mxu0 0.0
    %137 = vmatpush1.msra.mxu0 0.0
    %138 = vmatprep.subr.mxu0 0.0
    %139 = vmatpush1.msra.mxu0 0.0
    %140 = vmatprep.subr.mxu0 0.0
    %141 = vmatpush1.msra.mxu0 0.0
    %142 = vmatprep.subr.mxu0 0.0
    %143 = vmatpush1.msra.mxu0 0.0
    %144 = vmatprep.subr.mxu0 0.0
    %145 = vmatpush1.msra.mxu0 0.0
    %146 = vmatprep.subr.mxu0 0.0
    %147 = vmatpush1.msra.mxu0 0.0
    %148 = vmatprep.subr.mxu0 0.0
    %149 = vmatpush1.msra.mxu0 0.0
    %150 = vmatprep.subr.mxu0 0.0
    %151 = vmatpush1.msra.mxu0 0.0
    %152 = vmatprep.mubr.f32.mxu0 0.0
    %153 = vmatmul.mubr.f32.gmra.mrb[0].mxu0 %v86
    %v154 = vpop.f32.mrb[0].mxu0
    %v155 = vadd.f32 %v82, %v154
    %v156 = vpop.f32.mrb[0].mxu0
    %157 = vdwg.mxu0
    %v158 = vmax.f32 %v155, 0.0
    %v159 = vld [vmem:[#allocation8] sm:$0xff]
    %v160 = vld [vmem:[#allocation8 + $0x8] sm:$0xff]
    %v161 = vld [vmem:[%s4] sm:$0x1]
    %v163 = vlaneseq
    %v164 = vshrl.u32 %v163, 7
    %v165 = vsub.s32 0, %v164
    %v166 = vrot.slane %v161, %v165
    %v169 = vsel %vm84, %v158, 0
    %171 = vmatprep.subr.mxu0 0.0
    %172 = vmatpush1.msra.mxu0 %v159
    %173 = vmatprep.subr.mxu0 0.0
    %174 = vmatpush1.msra.mxu0 %v160
    %175 = vmatprep.subr.mxu0 0.0
    %176 = vmatpush1.msra.mxu0 0.0
    %177 = vmatprep.subr.mxu0 0.0
    %178 = vmatpush1.msra.mxu0 0.0
    %179 = vmatprep.subr.mxu0 0.0
    %180 = vmatpush1.msra.mxu0 0.0
    %181 = vmatprep.subr.mxu0 0.0
    %182 = vmatpush1.msra.mxu0 0.0
    %183 = vmatprep.subr.mxu0 0.0
    %184 = vmatpush1.msra.mxu0 0.0
    %185 = vmatprep.subr.mxu0 0.0
    %186 = vmatpush1.msra.mxu0 0.0
    %187 = vmatprep.subr.mxu0 0.0
    %188 = vmatpush1.msra.mxu0 0.0
    %189 = vmatprep.subr.mxu0 0.0
    %190 = vmatpush1.msra.mxu0 0.0
    %191 = vmatprep.subr.mxu0 0.0
    %192 = vmatpush1.msra.mxu0 0.0
    %193 = vmatprep.subr.mxu0 0.0
    %194 = vmatpush1.msra.mxu0 0.0
    %195 = vmatprep.subr.mxu0 0.0
    %196 = vmatpush1.msra.mxu0 0.0
    %197 = vmatprep.subr.mxu0 0.0
    %198 = vmatpush1.msra.mxu0 0.0
    %199 = vmatprep.subr.mxu0 0.0
    %200 = vmatpush1.msra.mxu0 0.0
    %201 = vmatprep.subr.mxu0 0.0
    %202 = vmatpush1.msra.mxu0 0.0
    %203 = vmatprep.subr.mxu0 0.0
    %204 = vmatpush1.msra.mxu0 0.0
    %205 = vmatprep.subr.mxu0 0.0
    %206 = vmatpush1.msra.mxu0 0.0
    %207 = vmatprep.subr.mxu0 0.0
    %208 = vmatpush1.msra.mxu0 0.0
    %209 = vmatprep.subr.mxu0 0.0
    %210 = vmatpush1.msra.mxu0 0.0
    %211 = vmatprep.subr.mxu0 0.0
    %212 = vmatpush1.msra.mxu0 0.0
    %213 = vmatprep.subr.mxu0 0.0
    %214 = vmatpush1.msra.mxu0 0.0
    %215 = vmatprep.subr.mxu0 0.0
    %216 = vmatpush1.msra.mxu0 0.0
    %217 = vmatprep.subr.mxu0 0.0
    %218 = vmatpush1.msra.mxu0 0.0
    %219 = vmatprep.subr.mxu0 0.0
    %220 = vmatpush1.msra.mxu0 0.0
    %221 = vmatprep.subr.mxu0 0.0
    %222 = vmatpush1.msra.mxu0 0.0
    %223 = vmatprep.subr.mxu0 0.0
    %224 = vmatpush1.msra.mxu0 0.0
    %225 = vmatprep.subr.mxu0 0.0
    %226 = vmatpush1.msra.mxu0 0.0
    %227 = vmatprep.subr.mxu0 0.0
    %228 = vmatpush1.msra.mxu0 0.0
    %229 = vmatprep.subr.mxu0 0.0
    %230 = vmatpush1.msra.mxu0 0.0
    %231 = vmatprep.subr.mxu0 0.0
    %232 = vmatpush1.msra.mxu0 0.0
    %233 = vmatprep.subr.mxu0 0.0
    %234 = vmatpush1.msra.mxu0 0.0
    %235 = vmatprep.mubr.f32.mxu0 0.0
    %236 = vmatmul.mubr.f32.gmra.mrb[0].mxu0 %v169
    %v237 = vpop.f32.mrb[0].mxu0
    %v238 = vadd.f32 %v166, %v237
    %v239 = vpop.f32.mrb[0].mxu0
    %240 = vdwg.mxu0
    %v241 = vmax.f32 %v238, 0.0
    %v242 = vld [vmem:[%s5] sm:$0xff]
    %v243 = vld [vmem:[%s5 + $0x8] sm:$0xff]
    %v244 = vld [vmem:[%s6] sm:$0x1]
    %v246 = vlaneseq
    %v247 = vshrl.u32 %v246, 7
    %v248 = vsub.s32 0, %v247
    %v249 = vrot.slane %v244, %v248
    %v252 = vsel %vm84, %v241, 0
    %254 = vmatprep.subr.mxu0 0.0
    %255 = vmatpush1.msra.mxu0 %v242
    %256 = vmatprep.subr.mxu0 0.0
    %257 = vmatpush1.msra.mxu0 %v243
    %258 = vmatprep.subr.mxu0 0.0
    %259 = vmatpush1.msra.mxu0 0.0
    %260 = vmatprep.subr.mxu0 0.0
    %261 = vmatpush1.msra.mxu0 0.0
    %262 = vmatprep.subr.mxu0 0.0
    %263 = vmatpush1.msra.mxu0 0.0
    %264 = vmatprep.subr.mxu0 0.0
    %265 = vmatpush1.msra.mxu0 0.0
    %266 = vmatprep.subr.mxu0 0.0
    %267 = vmatpush1.msra.mxu0 0.0
    %268 = vmatprep.subr.mxu0 0.0
    %269 = vmatpush1.msra.mxu0 0.0
    %270 = vmatprep.subr.mxu0 0.0
    %271 = vmatpush1.msra.mxu0 0.0
    %272 = vmatprep.subr.mxu0 0.0
    %273 = vmatpush1.msra.mxu0 0.0
    %274 = vmatprep.subr.mxu0 0.0
    %275 = vmatpush1.msra.mxu0 0.0
    %276 = vmatprep.subr.mxu0 0.0
    %277 = vmatpush1.msra.mxu0 0.0
    %278 = vmatprep.subr.mxu0 0.0
    %279 = vmatpush1.msra.mxu0 0.0
    %280 = vmatprep.subr.mxu0 0.0
    %281 = vmatpush1.msra.mxu0 0.0
    %282 = vmatprep.subr.mxu0 0.0
    %283 = vmatpush1.msra.mxu0 0.0
    %284 = vmatprep.subr.mxu0 0.0
    %285 = vmatpush1.msra.mxu0 0.0
    %286 = vmatprep.subr.mxu0 0.0
    %287 = vmatpush1.msra.mxu0 0.0
    %288 = vmatprep.subr.mxu0 0.0
    %289 = vmatpush1.msra.mxu0 0.0
    %290 = vmatprep.subr.mxu0 0.0
    %291 = vmatpush1.msra.mxu0 0.0
    %292 = vmatprep.subr.mxu0 0.0
    %293 = vmatpush1.msra.mxu0 0.0
    %294 = vmatprep.subr.mxu0 0.0
    %295 = vmatpush1.msra.mxu0 0.0
    %296 = vmatprep.subr.mxu0 0.0
    %297 = vmatpush1.msra.mxu0 0.0
    %298 = vmatprep.subr.mxu0 0.0
    %299 = vmatpush1.msra.mxu0 0.0
    %300 = vmatprep.subr.mxu0 0.0
    %301 = vmatpush1.msra.mxu0 0.0
    %302 = vmatprep.subr.mxu0 0.0
    %303 = vmatpush1.msra.mxu0 0.0
    %304 = vmatprep.subr.mxu0 0.0
    %305 = vmatpush1.msra.mxu0 0.0
    %306 = vmatprep.subr.mxu0 0.0
    %307 = vmatpush1.msra.mxu0 0.0
    %308 = vmatprep.subr.mxu0 0.0
    %309 = vmatpush1.msra.mxu0 0.0
    %310 = vmatprep.subr.mxu0 0.0
    %311 = vmatpush1.msra.mxu0 0.0
    %312 = vmatprep.subr.mxu0 0.0
    %313 = vmatpush1.msra.mxu0 0.0
    %314 = vmatprep.subr.mxu0 0.0
    %315 = vmatpush1.msra.mxu0 0.0
    %316 = vmatprep.subr.mxu0 0.0
    %317 = vmatpush1.msra.mxu0 0.0
    %318 = vmatprep.mubr.f32.mxu0 0.0
    %319 = vmatmul.mubr.f32.gmra.mrb[0].mxu0 %v252
    %v320 = vpop.f32.mrb[0].mxu0
    %v321 = vadd.f32 %v249, %v320
    %v322 = vpop.f32.mrb[0].mxu0
    %323 = vdwg.mxu0
    %v324 = vmax.f32 %v321, 0.0
    %v325 = vld [vmem:[%s7] sm:$0x1]
    %v326 = vld [vmem:[#allocation2] sm:$0x1]
    %328 = vset.pattern.permute.xlu0 0
    %329 = vperm.xlu0 %328, %v326
    %v330 = vpop.permute.xlu0 %329
    %v332 = vlaneseq
    %v333 = vshrl.u32 %v332, 7
    %v334 = vsub.s32 0, %v333
    %v335 = vrot.slane %v330, %v334
    %336 = vmatprep.subr.mxu0 0.0
    %337 = vmatpush1.xpose.msra.mxu0 %v324
    %338 = vmatprep.subr.mxu0 0.0
    %339 = vmatpush1.xpose.msra.mxu0 0.0
    %340 = vmatprep.subr.mxu0 0.0
    %341 = vmatpush1.xpose.msra.mxu0 0.0
    %342 = vmatprep.subr.mxu0 0.0
    %343 = vmatpush1.xpose.msra.mxu0 0.0
    %344 = vmatprep.subr.mxu0 0.0
    %345 = vmatpush1.xpose.msra.mxu0 0.0
    %346 = vmatprep.subr.mxu0 0.0
    %347 = vmatpush1.xpose.msra.mxu0 0.0
    %348 = vmatprep.subr.mxu0 0.0
    %349 = vmatpush1.xpose.msra.mxu0 0.0
    %350 = vmatprep.subr.mxu0 0.0
    %351 = vmatpush1.xpose.msra.mxu0 0.0
    %352 = vmatprep.subr.mxu0 0.0
    %353 = vmatpush1.xpose.msra.mxu0 0.0
    %354 = vmatprep.subr.mxu0 0.0
    %355 = vmatpush1.xpose.msra.mxu0 0.0
    %356 = vmatprep.subr.mxu0 0.0
    %357 = vmatpush1.xpose.msra.mxu0 0.0
    %358 = vmatprep.subr.mxu0 0.0
    %359 = vmatpush1.xpose.msra.mxu0 0.0
    %360 = vmatprep.subr.mxu0 0.0
    %361 = vmatpush1.xpose.msra.mxu0 0.0
    %362 = vmatprep.subr.mxu0 0.0
    %363 = vmatpush1.xpose.msra.mxu0 0.0
    %364 = vmatprep.subr.mxu0 0.0
    %365 = vmatpush1.xpose.msra.mxu0 0.0
    %366 = vmatprep.subr.mxu0 0.0
    %367 = vmatpush1.xpose.msra.mxu0 0.0
    %368 = vmatprep.subr.mxu0 0.0
    %369 = vmatpush1.xpose.msra.mxu0 0.0
    %370 = vmatprep.subr.mxu0 0.0
    %371 = vmatpush1.xpose.msra.mxu0 0.0
    %372 = vmatprep.subr.mxu0 0.0
    %373 = vmatpush1.xpose.msra.mxu0 0.0
    %374 = vmatprep.subr.mxu0 0.0
    %375 = vmatpush1.xpose.msra.mxu0 0.0
    %376 = vmatprep.subr.mxu0 0.0
    %377 = vmatpush1.xpose.msra.mxu0 0.0
    %378 = vmatprep.subr.mxu0 0.0
    %379 = vmatpush1.xpose.msra.mxu0 0.0
    %380 = vmatprep.subr.mxu0 0.0
    %381 = vmatpush1.xpose.msra.mxu0 0.0
    %382 = vmatprep.subr.mxu0 0.0
    %383 = vmatpush1.xpose.msra.mxu0 0.0
    %384 = vmatprep.subr.mxu0 0.0
    %385 = vmatpush1.xpose.msra.mxu0 0.0
    %386 = vmatprep.subr.mxu0 0.0
    %387 = vmatpush1.xpose.msra.mxu0 0.0
    %388 = vmatprep.subr.mxu0 0.0
    %389 = vmatpush1.xpose.msra.mxu0 0.0
    %390 = vmatprep.subr.mxu0 0.0
    %391 = vmatpush1.xpose.msra.mxu0 0.0
    %392 = vmatprep.subr.mxu0 0.0
    %393 = vmatpush1.xpose.msra.mxu0 0.0
    %394 = vmatprep.subr.mxu0 0.0
    %395 = vmatpush1.xpose.msra.mxu0 0.0
    %396 = vmatprep.subr.mxu0 0.0
    %397 = vmatpush1.xpose.msra.mxu0 0.0
    %398 = vmatprep.subr.mxu0 0.0
    %399 = vmatpush1.xpose.msra.mxu0 0.0
    %400 = vmatprep.mubr.f32.mxu0 0.0
    %401 = vmatmul.mubr.f32.gmra.mrb[0].mxu0 %v325
    %v402 = vpop.f32.mrb[0].mxu0
    %v403 = vadd.f32 %v335, %v402
    %v404 = vpop.f32.mrb[0].mxu0
    %405 = vdwg.mxu0
    %v406 = vtanh.pop %v403
    %vm407 = vcmask 57344
    %408 = vst.msk [vmem:[#allocation9] sm:$0x1] %vm407, %v406
    // Predicated region
    $region50: #{tpu_custom_call.1} parent=1 // pred_check
      _
    $region51: #{tpu_custom_call.1} parent=1 // pred_check_branch
      %410 = sbr.rel (0) target = $region53
    $region52: #{tpu_custom_call.1} parent=1 // pred_region
      %s412 = ssub.s32 16, 16
      %413 = vsyncadd [#allocation5], %s412
      %s415 = sshll.u32 [#allocation9], 4
      %s416 = int_to_ptr.vmem [resolvable:$true] %s415
      %418 = dma.vmem_to_hbm [thread:$0]  %s416, 16, %s9, [#allocation5]
    $region53: #{tpu_custom_call.1} parent=1 // pred_fallthru
      _
    // Predicated region
    $region54: #{tpu_custom_call.1} parent=1 // pred_check
      _
    $region55: #{tpu_custom_call.1} parent=1 // pred_check_branch
      %420 = sbr.rel (0) target = $region57
    $region56: #{tpu_custom_call.1} parent=1 // pred_region
      %421 = dma.done [#allocation5], 16
    $region57: #{tpu_custom_call.1} parent=1 // pred_fallthru
      _
    %422 = vsyncpa [#allocation4], 1
    %423 = vsyncpa [#allocation7], 1
    %424 = vsyncpa [#allocation5], 1

</llo_original>
